<compile_context>
chip_gen: v6e
topology: v6e:2x2x1
jax: 0.10.0
libtpu: 0.0.40
codegen_flags: <defaults>
</compile_context>

<pallas_src>
import functools

import jax
import jax.numpy as jnp
from jax import lax
from jax.experimental import pallas as pl
from jax.experimental.pallas import tpu as pltpu


# ---------------------------------------------------------------------------
# Helpers
# ---------------------------------------------------------------------------
def _pick_tile(size, preferred, align):
    """Largest t <= preferred with t % align == 0 and size % t == 0; else the
    full size (block == full array dim is always legal)."""
    if size <= preferred:
        return size
    t = (preferred // align) * align
    while t >= align:
        if size % t == 0:
            return t
        t -= align
    return size


def _pick_head_group(heads, dim_head):
    """Smallest group of heads (dividing `heads`) whose lane width
    h * dim_head is a multiple of 128 (lane-dense blocks & stores)."""
    for h in range(1, heads + 1):
        if heads % h == 0 and (h * dim_head) % 128 == 0:
            return h
    return None


def _vmem_limit_bytes(default=48 * 1024 * 1024):
    """Per-generation scoped-VMEM limit: 48 MiB floor (safe on v7x's 64 MiB),
    up to 96 MiB on v5e/v6e (128 MiB physical)."""
    try:
        cap = int(pltpu.get_tpu_info().vmem_capacity_bytes)
    except Exception:
        return default
    return max(default, min(cap * 3 // 4, 96 * 1024 * 1024))


# ---------------------------------------------------------------------------
# Linear kernels
# ---------------------------------------------------------------------------
def linear_fullk_kernel(*refs, has_bias):
    # refs: (x, w[, b], o);  x: (tm, K)  w: (K, tn)  b: (1, tn)  o: (tm, tn)
    if has_bias:
        x_ref, w_ref, b_ref, o_ref = refs
    else:
        x_ref, w_ref, o_ref = refs
        b_ref = None
    out = jnp.dot(x_ref[...], w_ref[...], preferred_element_type=jnp.float32)
    if has_bias:
        out = out + b_ref[...].astype(jnp.float32)
    o_ref[...] = out.astype(o_ref.dtype)


def linear_acc_kernel(*refs, has_bias):
    # refs: (x, w[, b], o, acc);  K-tiled path with f32 accumulator.
    if has_bias:
        x_ref, w_ref, b_ref, o_ref, acc_ref = refs
    else:
        x_ref, w_ref, o_ref, acc_ref = refs
        b_ref = None
    k = pl.program_id(2)

    @pl.when(k == 0)
    def _init():
        acc_ref[...] = jnp.zeros_like(acc_ref)

    acc_ref[...] += jnp.dot(x_ref[...], w_ref[...],
                            preferred_element_type=jnp.float32)

    @pl.when(k == pl.num_programs(2) - 1)
    def _finalize():
        out = acc_ref[...]
        if has_bias:
            out = out + b_ref[...].astype(jnp.float32)
        o_ref[...] = out.astype(o_ref.dtype)


def pallas_linear(x2d, w, bias=None, *, out_dtype=None, tm=256, tn=512,
                  fullk_budget_bytes=24 * 1024 * 1024):
    """Tiled y = x2d @ w (+ bias). x2d: (M, K), w: (K, N), bias: (1, N)."""
    M, K = x2d.shape
    K2, N = w.shape
    assert K == K2
    out_dtype = out_dtype or x2d.dtype
    has_bias = bias is not None

    m_align = 16 if x2d.dtype == jnp.bfloat16 else 8      # bf16 packs (16,128)
    btm = _pick_tile(M, tm, m_align)
    btn = _pick_tile(N, tn, 128)

    in_b = jnp.dtype(x2d.dtype).itemsize
    out_b = jnp.dtype(out_dtype).itemsize
    fullk_bytes = 2 * (btm * K + K * btn) * in_b + 2 * btm * btn * out_b
    if has_bias:
        fullk_bytes += 2 * btn * jnp.dtype(bias.dtype).itemsize

    vmem_limit = _vmem_limit_bytes()

    if fullk_bytes <= fullk_budget_bytes:
        # 2D grid, full-K block: no accumulator scratch, no k-axis revisits.
        kern = functools.partial(linear_fullk_kernel, has_bias=has_bias)
        in_specs = [
            pl.BlockSpec((btm, K), lambda i, j: (i, 0)),
            pl.BlockSpec((K, btn), lambda i, j: (0, j)),
        ]
        inputs = [x2d, w]
        if has_bias:
            in_specs.append(pl.BlockSpec((1, btn), lambda i, j: (0, j)))
            inputs.append(bias)
        return pl.pallas_call(
            kern,
            out_shape=jax.ShapeDtypeStruct((M, N), out_dtype),
            grid_spec=pltpu.PrefetchScalarGridSpec(
                num_scalar_prefetch=0,
                grid=(M // btm, N // btn),
                in_specs=in_specs,
                out_specs=pl.BlockSpec((btm, btn), lambda i, j: (i, j)),
            ),
            compiler_params=pltpu.CompilerParams(
                dimension_semantics=("parallel", "parallel"),
                vmem_limit_bytes=vmem_limit,
            ),
        )(*inputs)

    # Fallback: (M, N, K)-tiled with f32 accumulator, large K tiles, K last.
    btk = _pick_tile(K, 2048, 128)
    kern = functools.partial(linear_acc_kernel, has_bias=has_bias)
    in_specs = [
        pl.BlockSpec((btm, btk), lambda i, j, k: (i, k)),
        pl.BlockSpec((btk, btn), lambda i, j, k: (k, j)),
    ]
    inputs = [x2d, w]
    if has_bias:
        in_specs.append(pl.BlockSpec((1, btn), lambda i, j, k: (0, j)))
        inputs.append(bias)
    return pl.pallas_call(
        kern,
        out_shape=jax.ShapeDtypeStruct((M, N), out_dtype),
        grid_spec=pltpu.PrefetchScalarGridSpec(
            num_scalar_prefetch=0,
            grid=(M // btm, N // btn, K // btk),
            in_specs=in_specs,
            out_specs=pl.BlockSpec((btm, btn), lambda i, j, k: (i, j)),
            scratch_shapes=[pltpu.VMEM((btm, btn), jnp.float32)],
        ),
        compiler_params=pltpu.CompilerParams(
            dimension_semantics=("parallel", "parallel", "arbitrary"),
            vmem_limit_bytes=vmem_limit,
        ),
    )(*inputs)


# ---------------------------------------------------------------------------
# Flash-style attention kernel (online softmax over kv tiles)
# ---------------------------------------------------------------------------
def flash_attn_kernel(q_ref, k_ref, v_ref, o_ref, m_sc, l_sc, acc_sc, *,
                      h_blk, dim_head, scale):
    # Blocks: q/o (1, tq, W), k/v (1, tkv, W) with W = h_blk * dim_head
    # (multiple of 128 lanes), sliced straight out of the fused qkv buffer.
    # Scratch: m_sc/l_sc (h_blk, tq, 1) f32, acc_sc (tq, W) f32.
    ki = pl.program_id(3)

    @pl.when(ki == 0)
    def _init():
        m_sc[...] = jnp.full_like(m_sc, -jnp.inf)
        l_sc[...] = jnp.zeros_like(l_sc)
        acc_sc[...] = jnp.zeros_like(acc_sc)

    q = q_ref[0] * scale          # fold softmax scale into q: one (tq, W) mul
    k = k_ref[0]
    v = v_ref[0]

    for h in range(h_blk):        # static unroll over heads in the group
        sl = slice(h * dim_head, (h + 1) * dim_head)
        q_h, k_h, v_h = q[:, sl], k[:, sl], v[:, sl]
        # q k^T via dot_general (contract dim 1) -> no explicit XLU transpose.
        s = lax.dot_general(q_h, k_h, (((1,), (1,)), ((), ())),
                            preferred_element_type=jnp.float32)   # (tq, tkv)
        m_prev = m_sc[h]                                            # (tq, 1)
        m_new = jnp.maximum(m_prev, jnp.max(s, axis=-1, keepdims=True))
        alpha = jnp.exp(m_prev - m_new)
        p = jnp.exp(s - m_new)                                      # f32 (v5e-safe)
        l_sc[h] = alpha * l_sc[h] + jnp.sum(p, axis=-1, keepdims=True)
        pv = jnp.dot(p.astype(v_h.dtype), v_h,
                     preferred_element_type=jnp.float32)            # (tq, d_h)
        acc_sc[:, sl] = alpha * acc_sc[:, sl] + pv
        m_sc[h] = m_new

    @pl.when(ki == pl.num_programs(3) - 1)
    def _finalize():
        # Deferred denominator: scale the small (tq, dim_head) output, not the
        # (tq, tkv) probs; early downcast per head, single lane-dense store.
        outs = []
        for h in range(h_blk):
            sl = slice(h * dim_head, (h + 1) * dim_head)
            inv = pl.reciprocal(l_sc[h], approx=True)               # EUP slot
            outs.append((acc_sc[:, sl] * inv).astype(o_ref.dtype))
        o_ref[0] = jnp.concatenate(outs, axis=-1)


def pallas_attention_from_qkv(qkv, heads, dim_head, *, tq=256, tkv=512):
    """qkv: (B, N, 3*inner) fused projection (q | k | v along lanes).
    Returns (B, N, inner) attention output with heads merged (lane-contiguous)."""
    B, N, three_inner = qkv.shape
    inner = three_inner // 3
    assert inner == heads * dim_head

    h_blk = _pick_head_group(heads, dim_head)
    if h_blk is None:
        # TODO(synk): no 128-lane-aligned head grouping (e.g. dim_head=48);
        # would need a padded / masked-store path.
        raise ValueError(
            f"no head grouping with 128-lane-aligned width for heads={heads}, "
            f"dim_head={dim_head}")
    W = h_blk * dim_head          # lanes per block (multiple of 128)
    G = inner // W                # number of head groups
    scale = float(dim_head) ** -0.5

    btq = _pick_tile(N, tq, 8)
    btkv = _pick_tile(N, tkv, 8)
    n_q = N // btq
    n_kv = N // btkv

    kern = functools.partial(flash_attn_kernel, h_blk=h_blk,
                             dim_head=dim_head, scale=scale)

    # q / k / v live at lane-block offsets g, g+G, g+2*G inside the fused buffer.
    q_spec = pl.BlockSpec((1, btq, W), lambda b, g, qi, ki: (b, qi, g))
    k_spec = pl.BlockSpec((1, btkv, W), lambda b, g, qi, ki, G=G: (b, ki, g + G))
    v_spec = pl.BlockSpec((1, btkv, W),
                          lambda b, g, qi, ki, G=G: (b, ki, g + 2 * G))
    o_spec = pl.BlockSpec((1, btq, W), lambda b, g, qi, ki: (b, qi, g))

    return pl.pallas_call(
        kern,
        out_shape=jax.ShapeDtypeStruct((B, N, inner), qkv.dtype),
        grid_spec=pltpu.PrefetchScalarGridSpec(
            num_scalar_prefetch=0,
            grid=(B, G, n_q, n_kv),
            in_specs=[q_spec, k_spec, v_spec],
            out_specs=o_spec,
            scratch_shapes=[
                pltpu.VMEM((h_blk, btq, 1), jnp.float32),   # running max
                pltpu.VMEM((h_blk, btq, 1), jnp.float32),   # running sum
                pltpu.VMEM((btq, W), jnp.float32),          # output accumulator
            ],
        ),
        compiler_params=pltpu.CompilerParams(
            dimension_semantics=("parallel", "parallel", "parallel",
                                 "arbitrary"),
            vmem_limit_bytes=_vmem_limit_bytes(),
        ),
    )(qkv, qkv, qkv)


# ---------------------------------------------------------------------------
# Full module forward
# ---------------------------------------------------------------------------
def alt_act_attention(x, params, heads, *, compute_dtype=jnp.bfloat16):
    """x: (B, N, dim).  params: 'w_qkv' (dim, 3*inner), 'w_out' (inner, dim),
    'b_out' (1, dim).  val_act / post_attn_act / Dropout(0.0) are identities."""
    B, N, dim = x.shape
    w_qkv = params["w_qkv"]
    w_out = params["w_out"]
    b_out = params["b_out"]
    inner = w_out.shape[0]
    dim_head = inner // heads
    out_dtype = x.dtype

    # --- fused qkv projection (to_qkv has no bias); bf16 MXU, f32 accumulate ---
    x2d = x.reshape(B * N, dim).astype(compute_dtype)
    qkv = pallas_linear(x2d, w_qkv.astype(compute_dtype), bias=None,
                        out_dtype=compute_dtype)               # (B*N, 3*inner)
    qkv = qkv.reshape(B, N, 3 * inner)

    # val_act = None -> Identity
    # --- attention; heads indexed straight out of qkv, merged on write ---
    attn = pallas_attention_from_qkv(qkv, heads, dim_head)     # (B, N, inner)
    # post_attn_act = None -> Identity

    # --- output projection + bias (project_out=True path); Dropout(0) -> id ---
    out = pallas_linear(attn.reshape(B * N, inner),
                        w_out.astype(compute_dtype),
                        bias=b_out.astype(jnp.float32),
                        out_dtype=out_dtype)                    # (B*N, dim)
    return out.reshape(B, N, dim)


# ---------------------------------------------------------------------------
# Pure-JAX f32 reference for correctness check
# ---------------------------------------------------------------------------
def reference(x, params, heads):
    B, N, dim = x.shape
    inner = params["w_out"].shape[0]
    dim_head = inner // heads
    qkv = x @ params["w_qkv"]
    q, k, v = jnp.split(qkv, 3, axis=-1)

    def to_heads(t):
        return t.reshape(B, N, heads, dim_head).transpose(0, 2, 1, 3)

    qh, kh, vh = map(to_heads, (q, k, v))
    s = jnp.einsum("bhqd,bhkd->bhqk", qh, kh) / (dim_head ** 0.5)
    p = jax.nn.softmax(s, axis=-1)
    o = jnp.einsum("bhqk,bhkd->bhqd", p, vh)
    o = o.transpose(0, 2, 1, 3).reshape(B, N, inner)
    return o @ params["w_out"] + params["b_out"][0]


# ---------------------------------------------------------------------------
if __name__ == "__main__":
    # Small shapes consistent with the module: dim=32, heads=8, dim_head=16
    B, N, dim = 2, 8, 32
    heads, dim_head = 8, 16
    inner = heads * dim_head          # 128; project_out=True (heads != 1)

    key = jax.random.PRNGKey(0)
    kx, kq, ko, kb = jax.random.split(key, 4)

    x = jax.random.normal(kx, (B, N, dim), dtype=jnp.float32)
    params = {
        # weights stored pre-transposed: y = x @ w  (PyTorch Linear is x @ W^T)
        "w_qkv": jax.random.normal(kq, (dim, 3 * inner), jnp.float32) * 0.05,
        "w_out": jax.random.normal(ko, (inner, dim), jnp.float32) * 0.05,
        "b_out": jax.random.normal(kb, (1, dim), jnp.float32) * 0.05,
    }

    out = alt_act_attention(x, params, heads)
    out = jax.block_until_ready(out)

    ref = reference(x, params, heads)
    assert out.shape == (B, N, dim)
    # bf16 MXU operands + approx reciprocal -> relaxed tolerance vs f32 reference
    assert jnp.allclose(out, ref, rtol=3e-2, atol=3e-2), "mismatch vs reference"

    print("KERNEL_OK")
</pallas_src>

<mosaic_0001>
module attributes {stable_mosaic.version = 11 : i64} {
  func.func @linear_fullk_kernel(%arg0: i32, %arg1: i32, %arg2: memref<16x32xbf16, #tpu.memory_space<vmem>>, %arg3: memref<32x384xbf16, #tpu.memory_space<vmem>>, %arg4: memref<16x384xbf16, #tpu.memory_space<vmem>>) attributes {dimension_semantics = [#tpu.dimension_semantics<parallel>, #tpu.dimension_semantics<parallel>], iteration_bounds = array<i64: 1, 1>, scalar_prefetch = 0 : i64, scratch_operands = 0 : i64, tpu.core_type = #tpu.core_type<tc>, window_params = [{transform_indices = @transform_0, window_bounds = array<i64: 16, 32>}, {transform_indices = @transform_1, window_bounds = array<i64: 32, 384>}, {transform_indices = @transform_2, window_bounds = array<i64: 16, 384>}]} {
    %c0 = arith.constant 0 : index
    %c0_0 = arith.constant 0 : index
    %0 = vector.load %arg2[%c0, %c0_0] : memref<16x32xbf16, #tpu.memory_space<vmem>>, vector<16x32xbf16>
    %c0_1 = arith.constant 0 : index
    %c0_2 = arith.constant 0 : index
    %1 = vector.load %arg3[%c0_1, %c0_2] : memref<32x384xbf16, #tpu.memory_space<vmem>>, vector<32x384xbf16>
    %cst = arith.constant dense<0.000000e+00> : vector<16x384xf32>
    %2 = tpu.matmul %0, %1, %cst {dimension_numbers = #tpu.dot_dimension_numbers<[1], [0], [0], [1], [0, 0, 1, 1], [], []>} : vector<16x32xbf16>, vector<32x384xbf16>, vector<16x384xf32> -> vector<16x384xf32>
    %3 = arith.truncf %2 : vector<16x384xf32> to vector<16x384xbf16>
    %c0_3 = arith.constant 0 : index
    %c0_4 = arith.constant 0 : index
    %4 = vector.load %arg4[%c0_3, %c0_4] : memref<16x384xbf16, #tpu.memory_space<vmem>>, vector<16x384xbf16>
    tpu.vector_store %arg4[%c0_3, %c0_4], %3 {strides = array<i32>} : memref<16x384xbf16, #tpu.memory_space<vmem>>, vector<16x384xbf16>,
    return
  }
  func.func @transform_0(%arg0: i32, %arg1: i32) -> (i32, i32) {
    %c0_i32 = arith.constant 0 : i32
    %c0_i32_0 = arith.constant 0 : i32
    return %arg0, %c0_i32 : i32, i32
  }
  func.func @transform_1(%arg0: i32, %arg1: i32) -> (i32, i32) {
    %c0_i32 = arith.constant 0 : i32
    %c0_i32_0 = arith.constant 0 : i32
    return %c0_i32, %arg1 : i32, i32
  }
  func.func @transform_2(%arg0: i32, %arg1: i32) -> (i32, i32) {
    %c0_i32 = arith.constant 0 : i32
    return %arg0, %arg1 : i32, i32
  }
}

</mosaic_0001>

<llo_original>
// kernel: tpu_custom_call.1
$region0: #{tpu_custom_call.1}
  #allocation0 [shape = 'u32[]', space=smem, size = 0x4, offset = 0x4, fixed_abs, tag = 'smem constant byte address 0x4 - core index']
  #allocation1 [shape = 'u32[144,128]{1,0:T(1,128)}', space=vmem, size = 0x12000, scoped, tag = 'internal scratch']
  %s0 = inlined_call_operand.hbm [shape: bf16[16,32], index: 0, kind: input, shape index: {}]
  %s1 = inlined_call_operand.hbm [shape: bf16[32,384], index: 1, kind: input, shape index: {}]
  %s2 = inlined_call_operand.hbm [shape: bf16[16,384], index: 2, kind: output, shape index: {}]
  %s3 = sld [smem:[#allocation0]]
  $region26: #{tpu_custom_call.1} parent=0
    _
  %s5 = ssub.s32 1, %s3
  %s6 = scalar_select 0, %s5, %s3
  $region1: #{tpu_custom_call.1} parent=0
    #allocation2 [shape = 'u8[4096]{0}', space=vmem, size = 0x1000, scoped, tag = 'input window, operand 0, single buffered']
    #allocation3 [shape = 's32[1]{0}', space=sflag, size = 0x4, scoped, tag = 'scoped memory for tpu_custom_call.1']
    #allocation4 [shape = 's32[1]{0}', space=sflag, size = 0x4, scoped, tag = 'scoped memory for tpu_custom_call.1']
    #allocation5 [shape = 'u8[24576]{0}', space=vmem, size = 0x6000, scoped, tag = 'input window, operand 1, single buffered']
    #allocation6 [shape = 's32[1]{0}', space=sflag, size = 0x4, scoped, tag = 'scoped memory for tpu_custom_call.1']
    #allocation7 [shape = 'u8[12288]{0}', space=vmem, size = 0x3000, scoped, tag = 'output window, operand 0, single buffered']
    %7 = vsyncpa [#allocation3], 0
    %8 = vsyncpa [#allocation6], 0
    %9 = vsyncpa [#allocation4], 0
    // Predicated region
    $region2: #{tpu_custom_call.1} parent=1 // pred_check
      _
    $region3: #{tpu_custom_call.1} parent=1 // pred_check_branch
      %11 = sbr.rel (0) target = $region5
    $region4: #{tpu_custom_call.1} parent=1 // pred_region
      %s13 = ssub.s32 128, 128
      %14 = vsyncadd [#allocation3], %s13
      %s15 = sshll.u32 [#allocation2], 4
      %s16 = int_to_ptr.vmem [resolvable:$true] %s15
      %21 = dma.hbm_to_vmem [thread:$0]  %s0, 128, %s16, [#allocation3], 64, 64, 4
    $region5: #{tpu_custom_call.1} parent=1 // pred_fallthru
      _
    // Predicated region
    $region6: #{tpu_custom_call.1} parent=1 // pred_check
      _
    $region7: #{tpu_custom_call.1} parent=1 // pred_check_branch
      %23 = sbr.rel (0) target = $region9
    $region8: #{tpu_custom_call.1} parent=1 // pred_region
      %s25 = ssub.s32 768, 768
      %26 = vsyncadd [#allocation6], %s25
      %s27 = sshll.u32 [#allocation5], 4
      %s28 = int_to_ptr.vmem [resolvable:$true] %s27
      %33 = dma.hbm_to_vmem [thread:$0]  %s1, 768, %s28, [#allocation6], 192, 192, 12
    $region9: #{tpu_custom_call.1} parent=1 // pred_fallthru
      _
    // Predicated region
    $region10: #{tpu_custom_call.1} parent=1 // pred_check
      _
    $region11: #{tpu_custom_call.1} parent=1 // pred_check_branch
      %35 = sbr.rel (0) target = $region13
    $region12: #{tpu_custom_call.1} parent=1 // pred_region
      %36 = dma.done [#allocation3], 128
    $region13: #{tpu_custom_call.1} parent=1 // pred_fallthru
      _
    // Predicated region
    $region14: #{tpu_custom_call.1} parent=1 // pred_check
      _
    $region15: #{tpu_custom_call.1} parent=1 // pred_check_branch
      %38 = sbr.rel (0) target = $region17
    $region16: #{tpu_custom_call.1} parent=1 // pred_region
      %39 = dma.done [#allocation6], 768
    $region17: #{tpu_custom_call.1} parent=1 // pred_fallthru
      _
    %v41 = vld [vmem:[#allocation2] sm:$0xf]
    %v42 = vld [vmem:[#allocation2 + $0x4] sm:$0xf]
    %v43 = vld [vmem:[#allocation5] sm:$0xff]
    %v44 = vld [vmem:[#allocation5 + $0x8] sm:$0xf]
    %v45 = vld [vmem:[#allocation5 + $0xc] sm:$0xff]
    %v46 = vld [vmem:[#allocation5 + $0x14] sm:$0xf]
    %v47 = vld [vmem:[#allocation5 + $0x18] sm:$0xff]
    %v48 = vld [vmem:[#allocation5 + $0x20] sm:$0xf]
    %v49 = vld [vmem:[#allocation5 + $0x24] sm:$0xff]
    %v50 = vld [vmem:[#allocation5 + $0x2c] sm:$0xf]
    %v53 = vunpack.c.l.b16 %v41
    %v54 = vunpack.c.l.b16 %v42
    %v55 = vpack.c.b16 %v54, %v53
    %v64 = vunpack.c.l.b16 %v43
    %v65 = vunpack.c.h.b16 %v43
    %v66 = vunpack.c.l.b16 %v44
    %v67 = vunpack.c.l.b16 %v45
    %v68 = vunpack.c.h.b16 %v45
    %v69 = vunpack.c.l.b16 %v46
    %v70 = vunpack.c.l.b16 %v47
    %v71 = vunpack.c.h.b16 %v47
    %v72 = vunpack.c.l.b16 %v48
    %v73 = vunpack.c.l.b16 %v49
    %v74 = vunpack.c.h.b16 %v49
    %v75 = vunpack.c.l.b16 %v50
    %v76 = vpack.c.b16 %v67, %v64
    %v77 = vpack.c.b16 %v68, %v65
    %v78 = vpack.c.b16 %v69, %v66
    %v79 = vpack.c.b16 %v73, %v70
    %v80 = vpack.c.b16 %v74, %v71
    %v81 = vpack.c.b16 %v75, %v72
    %vm88 = vcmask 261120
    %v90 = vsel %vm88, %v55, 0
    %92 = vmatprep.subr.bf16.mxu0 0
    %93 = vmatpush1.bf16.msra.mxu0 0
    %94 = vmatprep.subr.bf16.mxu0 0
    %95 = vmatpush1.bf16.msra.mxu0 0
    %96 = vmatprep.subr.bf16.mxu0 0
    %97 = vmatpush1.bf16.msra.mxu0 0
    %98 = vmatprep.subr.bf16.mxu0 0
    %99 = vmatpush1.bf16.msra.mxu0 0
    %100 = vmatprep.subr.bf16.mxu0 0
    %101 = vmatpush1.bf16.msra.mxu0 0
    %102 = vmatprep.subr.bf16.mxu0 0
    %103 = vmatpush1.bf16.msra.mxu0 0
    %104 = vmatprep.subr.bf16.mxu0 %v80
    %105 = vmatpush1.bf16.msra.mxu0 %v79
    %106 = vmatprep.subr.bf16.mxu0 %v77
    %107 = vmatpush1.bf16.msra.mxu0 %v76
    %108 = vmatprep.subr.bf16.mxu0 0
    %109 = vmatpush2.bf16.msra.mxu0 0
    %110 = vmatprep.subr.bf16.mxu0 0
    %111 = vmatpush2.bf16.msra.mxu0 0
    %112 = vmatprep.subr.bf16.mxu0 0
    %113 = vmatpush2.bf16.msra.mxu0 0
    %114 = vmatprep.subr.bf16.mxu0 0
    %115 = vmatpush2.bf16.msra.mxu0 0
    %116 = vmatprep.subr.bf16.mxu0 0
    %117 = vmatpush2.bf16.msra.mxu0 0
    %118 = vmatprep.subr.bf16.mxu0 0
    %119 = vmatpush2.bf16.msra.mxu0 0
    %120 = vmatprep.subr.bf16.mxu0 0
    %121 = vmatpush2.bf16.msra.mxu0 0
    %122 = vmatprep.subr.bf16.mxu0 0
    %123 = vmatpush2.bf16.msra.mxu0 0
    %124 = vmatprep.mubr.bf16.mxu0 0
    %125 = vmatmul.mubr.bf16.gmra.mxu0 %v90
    %v126 = vpop.f32.mrf.mxu0
    %v127 = vadd.f32 0.0, %v126
    %v128 = vpop.f32.mrf.mxu0
    %v129 = vadd.f32 0.0, %v128
    %v130 = vpop.f32.mrf.mxu0
    %v131 = vadd.f32 0.0, %v130
    %v132 = vpop.f32.mrf.mxu0
    %v133 = vadd.f32 0.0, %v132
    %134 = vdwg.mxu0
    %135 = vmatprep.subr.bf16.mxu0 0
    %136 = vmatpush1.bf16.msra.mxu0 0
    %137 = vmatprep.subr.bf16.mxu0 0
    %138 = vmatpush1.bf16.msra.mxu0 0
    %139 = vmatprep.subr.bf16.mxu0 0
    %140 = vmatpush1.bf16.msra.mxu0 0
    %141 = vmatprep.subr.bf16.mxu0 0
    %142 = vmatpush1.bf16.msra.mxu0 0
    %143 = vmatprep.subr.bf16.mxu0 0
    %144 = vmatpush1.bf16.msra.mxu0 0
    %145 = vmatprep.subr.bf16.mxu0 0
    %146 = vmatpush1.bf16.msra.mxu0 0
    %147 = vmatprep.subr.bf16.mxu0 0
    %148 = vmatpush1.bf16.msra.mxu0 %v81
    %149 = vmatprep.subr.bf16.mxu0 0
    %150 = vmatpush1.bf16.msra.mxu0 %v78
    %151 = vmatprep.subr.bf16.mxu0 0
    %152 = vmatpush2.bf16.msra.mxu0 0
    %153 = vmatprep.subr.bf16.mxu0 0
    %154 = vmatpush2.bf16.msra.mxu0 0
    %155 = vmatprep.subr.bf16.mxu0 0
    %156 = vmatpush2.bf16.msra.mxu0 0
    %157 = vmatprep.subr.bf16.mxu0 0
    %158 = vmatpush2.bf16.msra.mxu0 0
    %159 = vmatprep.subr.bf16.mxu0 0
    %160 = vmatpush2.bf16.msra.mxu0 0
    %161 = vmatprep.subr.bf16.mxu0 0
    %162 = vmatpush2.bf16.msra.mxu0 0
    %163 = vmatprep.subr.bf16.mxu0 0
    %164 = vmatpush2.bf16.msra.mxu0 0
    %165 = vmatprep.subr.bf16.mxu0 0
    %166 = vmatpush2.bf16.msra.mxu0 0
    %167 = vmatprep.mubr.bf16.mxu0 0
    %168 = vmatmul.mubr.bf16.gmra.mxu0 %v90
    %v169 = vpop.f32.mrf.mxu0
    %v170 = vadd.f32 0.0, %v169
    %v171 = vpop.f32.mrf.mxu0
    %v172 = vpop.f32.mrf.mxu0
    %v173 = vadd.f32 0.0, %v172
    %v174 = vpop.f32.mrf.mxu0
    %175 = vdwg.mxu0
    %v176 = vpack.c.bf16 %v131, %v127
    %v177 = vpack.c.bf16 %v133, %v129
    %v178 = vpack.c.bf16 %v173, %v170
    %v182 = vunpack.c.l.b16 %v176
    %v183 = vunpack.c.l.b16 %v177
    %v184 = vunpack.c.l.b16 %v178
    %v185 = vunpack.c.h.b16 %v176
    %v186 = vunpack.c.h.b16 %v177
    %v187 = vunpack.c.h.b16 %v178
    %v188 = vpack.c.b16 %v183, %v182
    %v189 = vpack.c.b16 %v184, %v184
    %v190 = vpack.c.b16 %v186, %v185
    %v191 = vpack.c.b16 %v187, %v187
    %196 = vst [vmem:[#allocation7] sm:$0xff] %v188
    %197 = vst [vmem:[#allocation7 + $0x8] sm:$0xf] %v189
    %198 = vst [vmem:[#allocation7 + $0xc] sm:$0xff] %v190
    %199 = vst [vmem:[#allocation7 + $0x14] sm:$0xf] %v191
    // Predicated region
    $region18: #{tpu_custom_call.1} parent=1 // pred_check
      _
    $region19: #{tpu_custom_call.1} parent=1 // pred_check_branch
      %201 = sbr.rel (0) target = $region21
    $region20: #{tpu_custom_call.1} parent=1 // pred_region
      %s203 = ssub.s32 384, 384
      %204 = vsyncadd [#allocation4], %s203
      %s205 = sshll.u32 [#allocation7], 4
      %s206 = int_to_ptr.vmem [resolvable:$true] %s205
      %211 = dma.vmem_to_hbm [thread:$0]  %s206, 384, %s2, [#allocation4], 192, 192, 12
    $region21: #{tpu_custom_call.1} parent=1 // pred_fallthru
      _
    // Predicated region
    $region22: #{tpu_custom_call.1} parent=1 // pred_check
      _
    $region23: #{tpu_custom_call.1} parent=1 // pred_check_branch
      %213 = sbr.rel (0) target = $region25
    $region24: #{tpu_custom_call.1} parent=1 // pred_region
      %214 = dma.done [#allocation4], 384
    $region25: #{tpu_custom_call.1} parent=1 // pred_fallthru
      _
    %215 = vsyncpa [#allocation3], 1
    %216 = vsyncpa [#allocation6], 1
    %217 = vsyncpa [#allocation4], 1

</llo_original>
